<compile_context>
chip_gen: v7x
topology: tpu7x:2x2x1
jax: 0.10.0
libtpu: 0.0.40
codegen_flags: <defaults>
</compile_context>

<pallas_src>
import jax
import jax.numpy as jnp
from jax.experimental import pallas as pl
from jax.experimental.pallas import tpu as pltpu

INPUT_SIZE = 768
HIDDEN_SIZE = 10
OUTPUT_SIZE = 2

HIDDEN_PAD = 128      # lane-dense hidden width (h stays one full-lane vreg wide)
MAX_TILE_B = 2048     # 2048*768*4B = 6 MiB per x buffer; x2 double-buffer = 12 MiB


def _round_up(n, m):
    return ((n + m - 1) // m) * m


def _choose_tile_b(B, max_tile=MAX_TILE_B):
    """Padding-aware tile choice: >=2 tiles when possible (v7x dual-TC), sublane-aligned,
    last-tile padding bounded to < 1 tile, per-tile footprint capped for VMEM."""
    k = max(2, -(-B // max_tile))            # target number of tiles
    tile_b = _round_up(-(-B // k), 8)        # divisor-friendly, multiple of 8
    return max(8, min(tile_b, max_tile))


def _mlp_kernel(x_ref, w1_ref, b1_ref, w2_ref, b2_ref, o_ref):
    # x: [tile_b, 768], w1: [768, 128], b1: [1, 128], w2: [128, 2], b2: [1, 2]
    x = x_ref[...]
    # Casts are no-ops in the f32 path; in bf16 mode they happen in VMEM only.
    h = jnp.dot(x.astype(w1_ref.dtype), w1_ref[...],
                preferred_element_type=jnp.float32) + b1_ref[...]
    h = jnp.maximum(h, 0.0)                                          # ReLU (lane-dense)
    y = jnp.dot(h.astype(w2_ref.dtype), w2_ref[...],
                preferred_element_type=jnp.float32) + b2_ref[...]
    o_ref[...] = y.astype(o_ref.dtype)                               # narrow (2-wide) store


def prepare_params(w1, b1, w2, b2, *, mxu_bf16=False):
    """One-time weight prep (hoist out of the per-call path).

    Torch nn.Linear layout in: w1 [HIDDEN, INPUT], b1 [HIDDEN], w2 [OUT, HIDDEN], b2 [OUT].
    Returns transposed, hidden-dim-padded params. mxu_bf16 stores weights in bf16 so the
    kernel's MXU operands are bf16 (mainly a v5e win); accumulation stays f32.
    """
    wdt = jnp.bfloat16 if mxu_bf16 else jnp.float32
    w1p = jnp.pad(w1.T.astype(wdt), ((0, 0), (0, HIDDEN_PAD - HIDDEN_SIZE)))
    b1p = jnp.pad(b1.astype(jnp.float32).reshape(1, HIDDEN_SIZE),
                  ((0, 0), (0, HIDDEN_PAD - HIDDEN_SIZE)))
    w2p = jnp.pad(w2.T.astype(wdt), ((0, HIDDEN_PAD - HIDDEN_SIZE), (0, 0)))
    b2p = b2.astype(jnp.float32).reshape(1, OUTPUT_SIZE)
    return w1p, b1p, w2p, b2p


def mlp_forward_prepared(x, params, *, tile_b=None):
    """fc2(relu(fc1(x))) using pre-prepared (padded/transposed) params."""
    w1p, b1p, w2p, b2p = params
    B = x.shape[0]

    if tile_b is None:
        tile_b = _choose_tile_b(B)
    tile_b = max(8, _round_up(tile_b, 8))
    B_pad = _round_up(B, tile_b)
    if B_pad != B:
        x = jnp.pad(x, ((0, B_pad - B), (0, 0)))

    grid = (B_pad // tile_b,)

    x_item = jnp.dtype(x.dtype).itemsize
    w_item = jnp.dtype(w1p.dtype).itemsize
    cost = pl.CostEstimate(
        flops=2 * B_pad * INPUT_SIZE * HIDDEN_PAD + 2 * B_pad * HIDDEN_PAD * OUTPUT_SIZE,
        transcendentals=0,
        bytes_accessed=(B_pad * INPUT_SIZE * x_item                   # x stream (dominant)
                        + (w1p.size + w2p.size) * w_item              # weights (read once)
                        + (b1p.size + b2p.size) * 4                   # biases
                        + B_pad * OUTPUT_SIZE * 4),                   # narrow output writeback
    )

    out = pl.pallas_call(
        _mlp_kernel,
        out_shape=jax.ShapeDtypeStruct((B_pad, OUTPUT_SIZE), jnp.float32),
        grid=grid,
        in_specs=[
            pl.BlockSpec((tile_b, INPUT_SIZE), lambda i: (i, 0)),        # x: streamed per tile
            pl.BlockSpec((INPUT_SIZE, HIDDEN_PAD), lambda i: (0, 0)),    # w1: VMEM-resident
            pl.BlockSpec((1, HIDDEN_PAD), lambda i: (0, 0)),             # b1: VMEM-resident
            pl.BlockSpec((HIDDEN_PAD, OUTPUT_SIZE), lambda i: (0, 0)),   # w2: VMEM-resident
            pl.BlockSpec((1, OUTPUT_SIZE), lambda i: (0, 0)),            # b2: VMEM-resident
        ],
        out_specs=pl.BlockSpec((tile_b, OUTPUT_SIZE), lambda i: (i, 0)), # direct (B_pad, 2) store
        compiler_params=pltpu.CompilerParams(
            dimension_semantics=("parallel",),      # shard batch tiles across TCs (v7x)
            vmem_limit_bytes=32 * 1024 * 1024,      # safe on all gens; covers 2048-row tiles on v5e
        ),
        cost_estimate=cost,
    )(x, w1p, b1p, w2p, b2p)

    return out[:B] if B_pad != B else out


def mlp_forward(x, w1, b1, w2, b2, *, tile_b=None, mxu_bf16=False):
    """Convenience wrapper matching torch: fc2(relu(fc1(x))) with torch-layout weights."""
    params = prepare_params(w1, b1, w2, b2, mxu_bf16=mxu_bf16)
    return mlp_forward_prepared(x, params, tile_b=tile_b)


def init_params(key):
    # Mirrors nn.Linear's U(-1/sqrt(fan_in), 1/sqrt(fan_in)) init, torch layout.
    k1, k2, k3, k4 = jax.random.split(key, 4)
    bound1 = 1.0 / jnp.sqrt(INPUT_SIZE)
    bound2 = 1.0 / jnp.sqrt(HIDDEN_SIZE)
    w1 = jax.random.uniform(k1, (HIDDEN_SIZE, INPUT_SIZE), jnp.float32, -bound1, bound1)
    b1 = jax.random.uniform(k2, (HIDDEN_SIZE,), jnp.float32, -bound1, bound1)
    w2 = jax.random.uniform(k3, (OUTPUT_SIZE, HIDDEN_SIZE), jnp.float32, -bound2, bound2)
    b2 = jax.random.uniform(k4, (OUTPUT_SIZE,), jnp.float32, -bound2, bound2)
    return w1, b1, w2, b2


def reference_forward(x, w1, b1, w2, b2):
    h = jnp.maximum(x @ w1.T + b1, 0.0)
    return h @ w2.T + b2


if __name__ == "__main__":
    key = jax.random.PRNGKey(0)
    kx, kp = jax.random.split(key)
    w1, b1, w2, b2 = init_params(kp)
    params = prepare_params(w1, b1, w2, b2)   # one-time weight prep, reused across calls

    # Small deployment-style batch (single tile).
    batch = 8
    x = jax.random.normal(kx, (batch, INPUT_SIZE), jnp.float32)
    out = jax.block_until_ready(mlp_forward_prepared(x, params))
    ref = reference_forward(x, w1, b1, w2, b2)
    assert out.shape == (batch, OUTPUT_SIZE)
    assert jnp.allclose(out, ref, atol=1e-4, rtol=1e-4)

    # Ragged batch exercising the multi-tile "parallel" grid + batch-padding path.
    batch2 = 50
    x2 = jax.random.normal(kx, (batch2, INPUT_SIZE), jnp.float32)
    out2 = jax.block_until_ready(mlp_forward_prepared(x2, params))
    ref2 = reference_forward(x2, w1, b1, w2, b2)
    assert out2.shape == (batch2, OUTPUT_SIZE)
    assert jnp.allclose(out2, ref2, atol=1e-4, rtol=1e-4)

    print("KERNEL_OK")
</pallas_src>

<mosaic_0001>
module attributes {stable_mosaic.version = 11 : i64} {
  func.func @_mlp_kernel(%arg0: i32, %arg1: memref<8x768xf32, #tpu.memory_space<vmem>>, %arg2: memref<768x128xf32, #tpu.memory_space<vmem>>, %arg3: memref<1x128xf32, #tpu.memory_space<vmem>>, %arg4: memref<128x2xf32, #tpu.memory_space<vmem>>, %arg5: memref<1x2xf32, #tpu.memory_space<vmem>>, %arg6: memref<8x2xf32, #tpu.memory_space<vmem>>) attributes {dimension_semantics = [#tpu.dimension_semantics<parallel>], iteration_bounds = array<i64: 1>, scalar_prefetch = 0 : i64, scratch_operands = 0 : i64, tpu.core_type = #tpu.core_type<tc>, window_params = [{transform_indices = @transform_0, window_bounds = array<i64: 8, 768>}, {pipeline_mode = #tpu.pipeline_mode<synchronous>, transform_indices = @transform_1, window_bounds = array<i64: 768, 128>}, {pipeline_mode = #tpu.pipeline_mode<synchronous>, transform_indices = @transform_2, window_bounds = array<i64: 1, 128>}, {pipeline_mode = #tpu.pipeline_mode<synchronous>, transform_indices = @transform_3, window_bounds = array<i64: 128, 2>}, {pipeline_mode = #tpu.pipeline_mode<synchronous>, transform_indices = @transform_4, window_bounds = array<i64: 1, 2>}, {transform_indices = @transform_5, window_bounds = array<i64: 8, 2>}]} {
    %c0 = arith.constant 0 : index
    %c0_0 = arith.constant 0 : index
    %0 = vector.load %arg1[%c0, %c0_0] : memref<8x768xf32, #tpu.memory_space<vmem>>, vector<8x768xf32>
    %c0_1 = arith.constant 0 : index
    %c0_2 = arith.constant 0 : index
    %1 = vector.load %arg2[%c0_1, %c0_2] : memref<768x128xf32, #tpu.memory_space<vmem>>, vector<768x128xf32>
    %cst = arith.constant dense<0.000000e+00> : vector<8x128xf32>
    %2 = tpu.matmul %0, %1, %cst {dimension_numbers = #tpu.dot_dimension_numbers<[1], [0], [0], [1], [0, 0, 1, 1], [], []>} : vector<8x768xf32>, vector<768x128xf32>, vector<8x128xf32> -> vector<8x128xf32>
    %c0_3 = arith.constant 0 : index
    %c0_4 = arith.constant 0 : index
    %3 = vector.load %arg3[%c0_3, %c0_4] : memref<1x128xf32, #tpu.memory_space<vmem>>, vector<1x128xf32>
    %4 = vector.broadcast %3 : vector<1x128xf32> to vector<8x128xf32>
    %5 = arith.addf %2, %4 : vector<8x128xf32>
    %cst_5 = arith.constant 0.000000e+00 : f32
    %6 = vector.broadcast %cst_5 : f32 to vector<8x128xf32>
    %7 = arith.maximumf %5, %6 : vector<8x128xf32>
    %c0_6 = arith.constant 0 : index
    %c0_7 = arith.constant 0 : index
    %8 = vector.load %arg4[%c0_6, %c0_7] : memref<128x2xf32, #tpu.memory_space<vmem>>, vector<128x2xf32>
    %cst_8 = arith.constant dense<0.000000e+00> : vector<8x2xf32>
    %9 = tpu.matmul %7, %8, %cst_8 {dimension_numbers = #tpu.dot_dimension_numbers<[1], [0], [0], [1], [0, 0, 1, 1], [], []>} : vector<8x128xf32>, vector<128x2xf32>, vector<8x2xf32> -> vector<8x2xf32>
    %c0_9 = arith.constant 0 : index
    %c0_10 = arith.constant 0 : index
    %10 = vector.load %arg5[%c0_9, %c0_10] : memref<1x2xf32, #tpu.memory_space<vmem>>, vector<1x2xf32>
    %11 = vector.broadcast %10 : vector<1x2xf32> to vector<8x2xf32>
    %12 = arith.addf %9, %11 : vector<8x2xf32>
    %c0_11 = arith.constant 0 : index
    %c0_12 = arith.constant 0 : index
    %13 = vector.load %arg6[%c0_11, %c0_12] : memref<8x2xf32, #tpu.memory_space<vmem>>, vector<8x2xf32>
    tpu.vector_store %arg6[%c0_11, %c0_12], %12 {strides = array<i32>} : memref<8x2xf32, #tpu.memory_space<vmem>>, vector<8x2xf32>,
    return
  }
  func.func @transform_0(%arg0: i32) -> (i32, i32) {
    %c0_i32 = arith.constant 0 : i32
    %c0_i32_0 = arith.constant 0 : i32
    return %arg0, %c0_i32 : i32, i32
  }
  func.func @transform_1(%arg0: i32) -> (i32, i32) {
    %c0_i32 = arith.constant 0 : i32
    %c0_i32_0 = arith.constant 0 : i32
    %c0_i32_1 = arith.constant 0 : i32
    return %c0_i32, %c0_i32_0 : i32, i32
  }
  func.func @transform_2(%arg0: i32) -> (i32, i32) {
    %c0_i32 = arith.constant 0 : i32
    %c0_i32_0 = arith.constant 0 : i32
    %c0_i32_1 = arith.constant 0 : i32
    return %c0_i32, %c0_i32_0 : i32, i32
  }
  func.func @transform_3(%arg0: i32) -> (i32, i32) {
    %c0_i32 = arith.constant 0 : i32
    %c0_i32_0 = arith.constant 0 : i32
    %c0_i32_1 = arith.constant 0 : i32
    return %c0_i32, %c0_i32_0 : i32, i32
  }
  func.func @transform_4(%arg0: i32) -> (i32, i32) {
    %c0_i32 = arith.constant 0 : i32
    %c0_i32_0 = arith.constant 0 : i32
    %c0_i32_1 = arith.constant 0 : i32
    return %c0_i32, %c0_i32_0 : i32, i32
  }
  func.func @transform_5(%arg0: i32) -> (i32, i32) {
    %c0_i32 = arith.constant 0 : i32
    %c0_i32_0 = arith.constant 0 : i32
    return %arg0, %c0_i32 : i32, i32
  }
}

</mosaic_0001>

<llo_original>
// kernel: tpu_custom_call.1
$region0: #{tpu_custom_call.1}
  #allocation0 [shape = 'u32[]', space=smem, size = 0x4, offset = 0x4, fixed_abs, tag = 'smem constant byte address 0x4 - core index']
  #allocation1 [shape = 'u32[144,128]{1,0:T(1,128)}', space=vmem, size = 0x12000, scoped, tag = 'internal scratch']
  %s0 = inlined_call_operand.vmem [shape: f32[8,768], index: 0, kind: input, shape index: {}]
  %s1 = inlined_call_operand.hbm [shape: f32[768,128], index: 1, kind: input, shape index: {}]
  %s2 = inlined_call_operand.vmem [shape: f32[1,128], index: 2, kind: input, shape index: {}]
  %s3 = inlined_call_operand.vmem [shape: f32[128,2], index: 3, kind: input, shape index: {}]
  %s4 = inlined_call_operand.vmem [shape: f32[1,2], index: 4, kind: input, shape index: {}]
  %s5 = inlined_call_operand.vmem [shape: f32[8,2], index: 5, kind: output, shape index: {}]
  %s6 = sld [smem:[#allocation0]]
  $region34: #{tpu_custom_call.1} parent=0
    _
  %s8 = ssub.s32 1, %s6
  %s9 = scalar_select 0, %s8, %s6
  $region1: #{tpu_custom_call.1} parent=0
    #allocation2 [shape = 'u8[393216]{0}', space=vmem, size = 0x60000, scoped, tag = 'input window, operand 1, single buffered']
    #allocation3 [shape = 's32[1]{0}', space=sflag, size = 0x4, scoped, tag = 'scoped memory for tpu_custom_call.1']
    %10 = vsyncpa [#allocation3], 0
    // Predicated region
    $region2: #{tpu_custom_call.1} parent=1 // pred_check
      _
    $region3: #{tpu_custom_call.1} parent=1 // pred_check_branch
      %12 = sbr.rel (0) target = $region5
    $region4: #{tpu_custom_call.1} parent=1 // pred_region
      _
    $region5: #{tpu_custom_call.1} parent=1 // pred_fallthru
      _
    // Predicated region
    $region6: #{tpu_custom_call.1} parent=1 // pred_check
      _
    $region7: #{tpu_custom_call.1} parent=1 // pred_check_branch
      %14 = sbr.rel (0) target = $region9
    $region8: #{tpu_custom_call.1} parent=1 // pred_region
      %s16 = ssub.s32 12288, 12288
      %17 = vsyncadd [#allocation3], %s16
      %s18 = sshll.u32 [#allocation2], 4
      %s19 = int_to_ptr.vmem [resolvable:$true] %s18
      %24 = dma.hbm_to_vmem [thread:$0]  %s1, 12288, %s19, [#allocation3], 128, 128, 8
    $region9: #{tpu_custom_call.1} parent=1 // pred_fallthru
      _
    // Predicated region
    $region10: #{tpu_custom_call.1} parent=1 // pred_check
      _
    $region11: #{tpu_custom_call.1} parent=1 // pred_check_branch
      %26 = sbr.rel (0) target = $region13
    $region12: #{tpu_custom_call.1} parent=1 // pred_region
      _
    $region13: #{tpu_custom_call.1} parent=1 // pred_fallthru
      _
    // Predicated region
    $region14: #{tpu_custom_call.1} parent=1 // pred_check
      _
    $region15: #{tpu_custom_call.1} parent=1 // pred_check_branch
      %28 = sbr.rel (0) target = $region17
    $region16: #{tpu_custom_call.1} parent=1 // pred_region
      _
    $region17: #{tpu_custom_call.1} parent=1 // pred_fallthru
      _
    // Predicated region
    $region18: #{tpu_custom_call.1} parent=1 // pred_check
      _
    $region19: #{tpu_custom_call.1} parent=1 // pred_check_branch
      %30 = sbr.rel (0) target = $region21
    $region20: #{tpu_custom_call.1} parent=1 // pred_region
      _
    $region21: #{tpu_custom_call.1} parent=1 // pred_fallthru
      _
    // Predicated region
    $region22: #{tpu_custom_call.1} parent=1 // pred_check
      _
    $region23: #{tpu_custom_call.1} parent=1 // pred_check_branch
      %32 = sbr.rel (0) target = $region25
    $region24: #{tpu_custom_call.1} parent=1 // pred_region
      %33 = dma.done [#allocation3], 12288
    $region25: #{tpu_custom_call.1} parent=1 // pred_fallthru
      _
    %v34 = vld [vmem:[%s0] sm:$0xff]
    %v35 = vld [vmem:[%s0 + $0x8] sm:$0xff]
    %v36 = vld [vmem:[%s0 + $0x10] sm:$0xff]
    %v37 = vld [vmem:[%s0 + $0x18] sm:$0xff]
    %v38 = vld [vmem:[%s0 + $0x20] sm:$0xff]
    %v39 = vld [vmem:[%s0 + $0x28] sm:$0xff]
    %v40 = vld [vmem:[#allocation2] sm:$0xff]
    %v41 = vld [vmem:[#allocation2 + $0x8] sm:$0xff]
    %v42 = vld [vmem:[#allocation2 + $0x10] sm:$0xff]
    %v43 = vld [vmem:[#allocation2 + $0x18] sm:$0xff]
    %v44 = vld [vmem:[#allocation2 + $0x20] sm:$0xff]
    %v45 = vld [vmem:[#allocation2 + $0x28] sm:$0xff]
    %v46 = vld [vmem:[#allocation2 + $0x30] sm:$0xff]
    %v47 = vld [vmem:[#allocation2 + $0x38] sm:$0xff]
    %v48 = vld [vmem:[#allocation2 + $0x40] sm:$0xff]
    %v49 = vld [vmem:[#allocation2 + $0x48] sm:$0xff]
    %v50 = vld [vmem:[#allocation2 + $0x50] sm:$0xff]
    %v51 = vld [vmem:[#allocation2 + $0x58] sm:$0xff]
    %v52 = vld [vmem:[#allocation2 + $0x60] sm:$0xff]
    %v53 = vld [vmem:[#allocation2 + $0x68] sm:$0xff]
    %v54 = vld [vmem:[#allocation2 + $0x70] sm:$0xff]
    %v55 = vld [vmem:[#allocation2 + $0x78] sm:$0xff]
    %v56 = vld [vmem:[#allocation2 + $0x80] sm:$0xff]
    %v57 = vld [vmem:[#allocation2 + $0x88] sm:$0xff]
    %v58 = vld [vmem:[#allocation2 + $0x90] sm:$0xff]
    %v59 = vld [vmem:[#allocation2 + $0x98] sm:$0xff]
    %v60 = vld [vmem:[#allocation2 + $0xa0] sm:$0xff]
    %v61 = vld [vmem:[#allocation2 + $0xa8] sm:$0xff]
    %v62 = vld [vmem:[#allocation2 + $0xb0] sm:$0xff]
    %v63 = vld [vmem:[#allocation2 + $0xb8] sm:$0xff]
    %v64 = vld [vmem:[#allocation2 + $0xc0] sm:$0xff]
    %v65 = vld [vmem:[#allocation2 + $0xc8] sm:$0xff]
    %v66 = vld [vmem:[#allocation2 + $0xd0] sm:$0xff]
    %v67 = vld [vmem:[#allocation2 + $0xd8] sm:$0xff]
    %v68 = vld [vmem:[#allocation2 + $0xe0] sm:$0xff]
    %v69 = vld [vmem:[#allocation2 + $0xe8] sm:$0xff]
    %v70 = vld [vmem:[#allocation2 + $0xf0] sm:$0xff]
    %v71 = vld [vmem:[#allocation2 + $0xf8] sm:$0xff]
    %v72 = vld [vmem:[#allocation2 + $0x100] sm:$0xff]
    %v73 = vld [vmem:[#allocation2 + $0x108] sm:$0xff]
    %v74 = vld [vmem:[#allocation2 + $0x110] sm:$0xff]
    %v75 = vld [vmem:[#allocation2 + $0x118] sm:$0xff]
    %v76 = vld [vmem:[#allocation2 + $0x120] sm:$0xff]
    %v77 = vld [vmem:[#allocation2 + $0x128] sm:$0xff]
    %v78 = vld [vmem:[#allocation2 + $0x130] sm:$0xff]
    %v79 = vld [vmem:[#allocation2 + $0x138] sm:$0xff]
    %v80 = vld [vmem:[#allocation2 + $0x140] sm:$0xff]
    %v81 = vld [vmem:[#allocation2 + $0x148] sm:$0xff]
    %v82 = vld [vmem:[#allocation2 + $0x150] sm:$0xff]
    %v83 = vld [vmem:[#allocation2 + $0x158] sm:$0xff]
    %v84 = vld [vmem:[#allocation2 + $0x160] sm:$0xff]
    %v85 = vld [vmem:[#allocation2 + $0x168] sm:$0xff]
    %v86 = vld [vmem:[#allocation2 + $0x170] sm:$0xff]
    %v87 = vld [vmem:[#allocation2 + $0x178] sm:$0xff]
    %v88 = vld [vmem:[#allocation2 + $0x180] sm:$0xff]
    %v89 = vld [vmem:[#allocation2 + $0x188] sm:$0xff]
    %v90 = vld [vmem:[#allocation2 + $0x190] sm:$0xff]
    %v91 = vld [vmem:[#allocation2 + $0x198] sm:$0xff]
    %v92 = vld [vmem:[#allocation2 + $0x1a0] sm:$0xff]
    %v93 = vld [vmem:[#allocation2 + $0x1a8] sm:$0xff]
    %v94 = vld [vmem:[#allocation2 + $0x1b0] sm:$0xff]
    %v95 = vld [vmem:[#allocation2 + $0x1b8] sm:$0xff]
    %v96 = vld [vmem:[#allocation2 + $0x1c0] sm:$0xff]
    %v97 = vld [vmem:[#allocation2 + $0x1c8] sm:$0xff]
    %v98 = vld [vmem:[#allocation2 + $0x1d0] sm:$0xff]
    %v99 = vld [vmem:[#allocation2 + $0x1d8] sm:$0xff]
    %v100 = vld [vmem:[#allocation2 + $0x1e0] sm:$0xff]
    %v101 = vld [vmem:[#allocation2 + $0x1e8] sm:$0xff]
    %v102 = vld [vmem:[#allocation2 + $0x1f0] sm:$0xff]
    %v103 = vld [vmem:[#allocation2 + $0x1f8] sm:$0xff]
    %v104 = vld [vmem:[#allocation2 + $0x200] sm:$0xff]
    %v105 = vld [vmem:[#allocation2 + $0x208] sm:$0xff]
    %v106 = vld [vmem:[#allocation2 + $0x210] sm:$0xff]
    %v107 = vld [vmem:[#allocation2 + $0x218] sm:$0xff]
    %v108 = vld [vmem:[#allocation2 + $0x220] sm:$0xff]
    %v109 = vld [vmem:[#allocation2 + $0x228] sm:$0xff]
    %v110 = vld [vmem:[#allocation2 + $0x230] sm:$0xff]
    %v111 = vld [vmem:[#allocation2 + $0x238] sm:$0xff]
    %v112 = vld [vmem:[#allocation2 + $0x240] sm:$0xff]
    %v113 = vld [vmem:[#allocation2 + $0x248] sm:$0xff]
    %v114 = vld [vmem:[#allocation2 + $0x250] sm:$0xff]
    %v115 = vld [vmem:[#allocation2 + $0x258] sm:$0xff]
    %v116 = vld [vmem:[#allocation2 + $0x260] sm:$0xff]
    %v117 = vld [vmem:[#allocation2 + $0x268] sm:$0xff]
    %v118 = vld [vmem:[#allocation2 + $0x270] sm:$0xff]
    %v119 = vld [vmem:[#allocation2 + $0x278] sm:$0xff]
    %v120 = vld [vmem:[#allocation2 + $0x280] sm:$0xff]
    %v121 = vld [vmem:[#allocation2 + $0x288] sm:$0xff]
    %v122 = vld [vmem:[#allocation2 + $0x290] sm:$0xff]
    %v123 = vld [vmem:[#allocation2 + $0x298] sm:$0xff]
    %v124 = vld [vmem:[#allocation2 + $0x2a0] sm:$0xff]
    %v125 = vld [vmem:[#allocation2 + $0x2a8] sm:$0xff]
    %v126 = vld [vmem:[#allocation2 + $0x2b0] sm:$0xff]
    %v127 = vld [vmem:[#allocation2 + $0x2b8] sm:$0xff]
    %v128 = vld [vmem:[#allocation2 + $0x2c0] sm:$0xff]
    %v129 = vld [vmem:[#allocation2 + $0x2c8] sm:$0xff]
    %v130 = vld [vmem:[#allocation2 + $0x2d0] sm:$0xff]
    %v131 = vld [vmem:[#allocation2 + $0x2d8] sm:$0xff]
    %v132 = vld [vmem:[#allocation2 + $0x2e0] sm:$0xff]
    %v133 = vld [vmem:[#allocation2 + $0x2e8] sm:$0xff]
    %v134 = vld [vmem:[#allocation2 + $0x2f0] sm:$0xff]
    %v135 = vld [vmem:[#allocation2 + $0x2f8] sm:$0xff]
    %v136 = vld [vmem:[%s2] sm:$0x1]
    %v138 = vlaneseq
    %v139 = vshrl.u32 %v138, 7
    %v140 = vsub.s32 0, %v139
    %v141 = vrot.slane %v136, %v140
    %143 = vmatprep.subr.mxu0 0.0
    %144 = vmatpush1.msra.mxu0 %v40
    %145 = vmatprep.subr.mxu0 0.0
    %146 = vmatpush1.msra.mxu0 %v41
    %147 = vmatprep.subr.mxu0 0.0
    %148 = vmatpush1.msra.mxu0 %v42
    %149 = vmatprep.subr.mxu0 0.0
    %150 = vmatpush1.msra.mxu0 %v43
    %151 = vmatprep.subr.mxu0 0.0
    %152 = vmatpush1.msra.mxu0 %v44
    %153 = vmatprep.subr.mxu0 0.0
    %154 = vmatpush1.msra.mxu0 %v45
    %155 = vmatprep.subr.mxu0 0.0
    %156 = vmatpush1.msra.mxu0 %v46
    %157 = vmatprep.subr.mxu0 0.0
    %158 = vmatpush1.msra.mxu0 %v47
    %159 = vmatprep.subr.mxu0 0.0
    %160 = vmatpush1.msra.mxu0 %v48
    %161 = vmatprep.subr.mxu0 0.0
    %162 = vmatpush1.msra.mxu0 %v49
    %163 = vmatprep.subr.mxu0 0.0
    %164 = vmatpush1.msra.mxu0 %v50
    %165 = vmatprep.subr.mxu0 0.0
    %166 = vmatpush1.msra.mxu0 %v51
    %167 = vmatprep.subr.mxu0 0.0
    %168 = vmatpush1.msra.mxu0 %v52
    %169 = vmatprep.subr.mxu0 0.0
    %170 = vmatpush1.msra.mxu0 %v53
    %171 = vmatprep.subr.mxu0 0.0
    %172 = vmatpush1.msra.mxu0 %v54
    %173 = vmatprep.subr.mxu0 0.0
    %174 = vmatpush1.msra.mxu0 %v55
    %175 = vmatprep.subr.mxu0 0.0
    %176 = vmatpush1.msra.mxu0 %v56
    %177 = vmatprep.subr.mxu0 0.0
    %178 = vmatpush1.msra.mxu0 %v57
    %179 = vmatprep.subr.mxu0 0.0
    %180 = vmatpush1.msra.mxu0 %v58
    %181 = vmatprep.subr.mxu0 0.0
    %182 = vmatpush1.msra.mxu0 %v59
    %183 = vmatprep.subr.mxu0 0.0
    %184 = vmatpush1.msra.mxu0 %v60
    %185 = vmatprep.subr.mxu0 0.0
    %186 = vmatpush1.msra.mxu0 %v61
    %187 = vmatprep.subr.mxu0 0.0
    %188 = vmatpush1.msra.mxu0 %v62
    %189 = vmatprep.subr.mxu0 0.0
    %190 = vmatpush1.msra.mxu0 %v63
    %191 = vmatprep.subr.mxu0 0.0
    %192 = vmatpush1.msra.mxu0 %v64
    %193 = vmatprep.subr.mxu0 0.0
    %194 = vmatpush1.msra.mxu0 %v65
    %195 = vmatprep.subr.mxu0 0.0
    %196 = vmatpush1.msra.mxu0 %v66
    %197 = vmatprep.subr.mxu0 0.0
    %198 = vmatpush1.msra.mxu0 %v67
    %199 = vmatprep.subr.mxu0 0.0
    %200 = vmatpush1.msra.mxu0 %v68
    %201 = vmatprep.subr.mxu0 0.0
    %202 = vmatpush1.msra.mxu0 %v69
    %203 = vmatprep.subr.mxu0 0.0
    %204 = vmatpush1.msra.mxu0 %v70
    %205 = vmatprep.subr.mxu0 0.0
    %206 = vmatpush1.msra.mxu0 %v71
    %207 = vmatprep.mubr.f32.mxu0 %v35
    %208 = vmatmul.mubr.f32.gmra.mrb[0].mxu0 %v34
    %v209 = vpop.f32.mrb[0].mxu0
    %v210 = vadd.f32 %v141, %v209
    %v211 = vpop.f32.mrb[0].mxu0
    %212 = vdwg.mxu0
    %213 = vmatprep.subr.mxu0 0.0
    %214 = vmatpush1.msra.mxu0 %v72
    %215 = vmatprep.subr.mxu0 0.0
    %216 = vmatpush1.msra.mxu0 %v73
    %217 = vmatprep.subr.mxu0 0.0
    %218 = vmatpush1.msra.mxu0 %v74
    %219 = vmatprep.subr.mxu0 0.0
    %220 = vmatpush1.msra.mxu0 %v75
    %221 = vmatprep.subr.mxu0 0.0
    %222 = vmatpush1.msra.mxu0 %v76
    %223 = vmatprep.subr.mxu0 0.0
    %224 = vmatpush1.msra.mxu0 %v77
    %225 = vmatprep.subr.mxu0 0.0
    %226 = vmatpush1.msra.mxu0 %v78
    %227 = vmatprep.subr.mxu0 0.0
    %228 = vmatpush1.msra.mxu0 %v79
    %229 = vmatprep.subr.mxu0 0.0
    %230 = vmatpush1.msra.mxu0 %v80
    %231 = vmatprep.subr.mxu0 0.0
    %232 = vmatpush1.msra.mxu0 %v81
    %233 = vmatprep.subr.mxu0 0.0
    %234 = vmatpush1.msra.mxu0 %v82
    %235 = vmatprep.subr.mxu0 0.0
    %236 = vmatpush1.msra.mxu0 %v83
    %237 = vmatprep.subr.mxu0 0.0
    %238 = vmatpush1.msra.mxu0 %v84
    %239 = vmatprep.subr.mxu0 0.0
    %240 = vmatpush1.msra.mxu0 %v85
    %241 = vmatprep.subr.mxu0 0.0
    %242 = vmatpush1.msra.mxu0 %v86
    %243 = vmatprep.subr.mxu0 0.0
    %244 = vmatpush1.msra.mxu0 %v87
    %245 = vmatprep.subr.mxu0 0.0
    %246 = vmatpush1.msra.mxu0 %v88
    %247 = vmatprep.subr.mxu0 0.0
    %248 = vmatpush1.msra.mxu0 %v89
    %249 = vmatprep.subr.mxu0 0.0
    %250 = vmatpush1.msra.mxu0 %v90
    %251 = vmatprep.subr.mxu0 0.0
    %252 = vmatpush1.msra.mxu0 %v91
    %253 = vmatprep.subr.mxu0 0.0
    %254 = vmatpush1.msra.mxu0 %v92
    %255 = vmatprep.subr.mxu0 0.0
    %256 = vmatpush1.msra.mxu0 %v93
    %257 = vmatprep.subr.mxu0 0.0
    %258 = vmatpush1.msra.mxu0 %v94
    %259 = vmatprep.subr.mxu0 0.0
    %260 = vmatpush1.msra.mxu0 %v95
    %261 = vmatprep.subr.mxu0 0.0
    %262 = vmatpush1.msra.mxu0 %v96
    %263 = vmatprep.subr.mxu0 0.0
    %264 = vmatpush1.msra.mxu0 %v97
    %265 = vmatprep.subr.mxu0 0.0
    %266 = vmatpush1.msra.mxu0 %v98
    %267 = vmatprep.subr.mxu0 0.0
    %268 = vmatpush1.msra.mxu0 %v99
    %269 = vmatprep.subr.mxu0 0.0
    %270 = vmatpush1.msra.mxu0 %v100
    %271 = vmatprep.subr.mxu0 0.0
    %272 = vmatpush1.msra.mxu0 %v101
    %273 = vmatprep.subr.mxu0 0.0
    %274 = vmatpush1.msra.mxu0 %v102
    %275 = vmatprep.subr.mxu0 0.0
    %276 = vmatpush1.msra.mxu0 %v103
    %277 = vmatprep.mubr.f32.mxu0 %v37
    %278 = vmatmul.mubr.f32.gmra.mrb[0].mxu0 %v36
    %v279 = vpop.f32.mrb[0].mxu0
    %v280 = vadd.f32 %v210, %v279
    %v281 = vpop.f32.mrb[0].mxu0
    %282 = vdwg.mxu0
    %283 = vmatprep.subr.mxu0 0.0
    %284 = vmatpush1.msra.mxu0 %v104
    %285 = vmatprep.subr.mxu0 0.0
    %286 = vmatpush1.msra.mxu0 %v105
    %287 = vmatprep.subr.mxu0 0.0
    %288 = vmatpush1.msra.mxu0 %v106
    %289 = vmatprep.subr.mxu0 0.0
    %290 = vmatpush1.msra.mxu0 %v107
    %291 = vmatprep.subr.mxu0 0.0
    %292 = vmatpush1.msra.mxu0 %v108
    %293 = vmatprep.subr.mxu0 0.0
    %294 = vmatpush1.msra.mxu0 %v109
    %295 = vmatprep.subr.mxu0 0.0
    %296 = vmatpush1.msra.mxu0 %v110
    %297 = vmatprep.subr.mxu0 0.0
    %298 = vmatpush1.msra.mxu0 %v111
    %299 = vmatprep.subr.mxu0 0.0
    %300 = vmatpush1.msra.mxu0 %v112
    %301 = vmatprep.subr.mxu0 0.0
    %302 = vmatpush1.msra.mxu0 %v113
    %303 = vmatprep.subr.mxu0 0.0
    %304 = vmatpush1.msra.mxu0 %v114
    %305 = vmatprep.subr.mxu0 0.0
    %306 = vmatpush1.msra.mxu0 %v115
    %307 = vmatprep.subr.mxu0 0.0
    %308 = vmatpush1.msra.mxu0 %v116
    %309 = vmatprep.subr.mxu0 0.0
    %310 = vmatpush1.msra.mxu0 %v117
    %311 = vmatprep.subr.mxu0 0.0
    %312 = vmatpush1.msra.mxu0 %v118
    %313 = vmatprep.subr.mxu0 0.0
    %314 = vmatpush1.msra.mxu0 %v119
    %315 = vmatprep.subr.mxu0 0.0
    %316 = vmatpush1.msra.mxu0 %v120
    %317 = vmatprep.subr.mxu0 0.0
    %318 = vmatpush1.msra.mxu0 %v121
    %319 = vmatprep.subr.mxu0 0.0
    %320 = vmatpush1.msra.mxu0 %v122
    %321 = vmatprep.subr.mxu0 0.0
    %322 = vmatpush1.msra.mxu0 %v123
    %323 = vmatprep.subr.mxu0 0.0
    %324 = vmatpush1.msra.mxu0 %v124
    %325 = vmatprep.subr.mxu0 0.0
    %326 = vmatpush1.msra.mxu0 %v125
    %327 = vmatprep.subr.mxu0 0.0
    %328 = vmatpush1.msra.mxu0 %v126
    %329 = vmatprep.subr.mxu0 0.0
    %330 = vmatpush1.msra.mxu0 %v127
    %331 = vmatprep.subr.mxu0 0.0
    %332 = vmatpush1.msra.mxu0 %v128
    %333 = vmatprep.subr.mxu0 0.0
    %334 = vmatpush1.msra.mxu0 %v129
    %335 = vmatprep.subr.mxu0 0.0
    %336 = vmatpush1.msra.mxu0 %v130
    %337 = vmatprep.subr.mxu0 0.0
    %338 = vmatpush1.msra.mxu0 %v131
    %339 = vmatprep.subr.mxu0 0.0
    %340 = vmatpush1.msra.mxu0 %v132
    %341 = vmatprep.subr.mxu0 0.0
    %342 = vmatpush1.msra.mxu0 %v133
    %343 = vmatprep.subr.mxu0 0.0
    %344 = vmatpush1.msra.mxu0 %v134
    %345 = vmatprep.subr.mxu0 0.0
    %346 = vmatpush1.msra.mxu0 %v135
    %347 = vmatprep.mubr.f32.mxu0 %v39
    %348 = vmatmul.mubr.f32.gmra.mrb[0].mxu0 %v38
    %v349 = vpop.f32.mrb[0].mxu0
    %v350 = vadd.f32 %v280, %v349
    %v351 = vpop.f32.mrb[0].mxu0
    %352 = vdwg.mxu0
    %v353 = vmax.f32 %v350, 0.0
    %v354 = vld [vmem:[%s3] sm:$0xff]
    %v355 = vld [vmem:[%s3 + $0x8] sm:$0xff]
    %v356 = vld [vmem:[%s3 + $0x10] sm:$0xff]
    %v357 = vld [vmem:[%s3 + $0x18] sm:$0xff]
    %v358 = vld [vmem:[%s3 + $0x20] sm:$0xff]
    %v359 = vld [vmem:[%s3 + $0x28] sm:$0xff]
    %v360 = vld [vmem:[%s3 + $0x30] sm:$0xff]
    %v361 = vld [vmem:[%s3 + $0x38] sm:$0xff]
    %v362 = vld [vmem:[%s3 + $0x40] sm:$0xff]
    %v363 = vld [vmem:[%s3 + $0x48] sm:$0xff]
    %v364 = vld [vmem:[%s3 + $0x50] sm:$0xff]
    %v365 = vld [vmem:[%s3 + $0x58] sm:$0xff]
    %v366 = vld [vmem:[%s3 + $0x60] sm:$0xff]
    %v367 = vld [vmem:[%s3 + $0x68] sm:$0xff]
    %v368 = vld [vmem:[%s3 + $0x70] sm:$0xff]
    %v369 = vld [vmem:[%s3 + $0x78] sm:$0xff]
    %v370 = vld [vmem:[%s4] sm:$0x1]
    %v372 = vlaneseq
    %v373 = vshrl.u32 %v372, 7
    %v374 = vsub.s32 0, %v373
    %v375 = vrot.slane %v370, %v374
    %377 = vmatprep.subr.mxu0 0.0
    %378 = vmatpush1.msra.mxu0 %v354
    %379 = vmatprep.subr.mxu0 0.0
    %380 = vmatpush1.msra.mxu0 %v355
    %381 = vmatprep.subr.mxu0 0.0
    %382 = vmatpush1.msra.mxu0 %v356
    %383 = vmatprep.subr.mxu0 0.0
    %384 = vmatpush1.msra.mxu0 %v357
    %385 = vmatprep.subr.mxu0 0.0
    %386 = vmatpush1.msra.mxu0 %v358
    %387 = vmatprep.subr.mxu0 0.0
    %388 = vmatpush1.msra.mxu0 %v359
    %389 = vmatprep.subr.mxu0 0.0
    %390 = vmatpush1.msra.mxu0 %v360
    %391 = vmatprep.subr.mxu0 0.0
    %392 = vmatpush1.msra.mxu0 %v361
    %393 = vmatprep.subr.mxu0 0.0
    %394 = vmatpush1.msra.mxu0 %v362
    %395 = vmatprep.subr.mxu0 0.0
    %396 = vmatpush1.msra.mxu0 %v363
    %397 = vmatprep.subr.mxu0 0.0
    %398 = vmatpush1.msra.mxu0 %v364
    %399 = vmatprep.subr.mxu0 0.0
    %400 = vmatpush1.msra.mxu0 %v365
    %401 = vmatprep.subr.mxu0 0.0
    %402 = vmatpush1.msra.mxu0 %v366
    %403 = vmatprep.subr.mxu0 0.0
    %404 = vmatpush1.msra.mxu0 %v367
    %405 = vmatprep.subr.mxu0 0.0
    %406 = vmatpush1.msra.mxu0 %v368
    %407 = vmatprep.subr.mxu0 0.0
    %408 = vmatpush1.msra.mxu0 %v369
    %409 = vmatprep.subr.mxu0 0.0
    %410 = vmatpush1.msra.mxu0 0.0
    %411 = vmatprep.subr.mxu0 0.0
    %412 = vmatpush1.msra.mxu0 0.0
    %413 = vmatprep.subr.mxu0 0.0
    %414 = vmatpush1.msra.mxu0 0.0
    %415 = vmatprep.subr.mxu0 0.0
    %416 = vmatpush1.msra.mxu0 0.0
    %417 = vmatprep.subr.mxu0 0.0
    %418 = vmatpush1.msra.mxu0 0.0
    %419 = vmatprep.subr.mxu0 0.0
    %420 = vmatpush1.msra.mxu0 0.0
    %421 = vmatprep.subr.mxu0 0.0
    %422 = vmatpush1.msra.mxu0 0.0
    %423 = vmatprep.subr.mxu0 0.0
    %424 = vmatpush1.msra.mxu0 0.0
    %425 = vmatprep.subr.mxu0 0.0
    %426 = vmatpush1.msra.mxu0 0.0
    %427 = vmatprep.subr.mxu0 0.0
    %428 = vmatpush1.msra.mxu0 0.0
    %429 = vmatprep.subr.mxu0 0.0
    %430 = vmatpush1.msra.mxu0 0.0
    %431 = vmatprep.subr.mxu0 0.0
    %432 = vmatpush1.msra.mxu0 0.0
    %433 = vmatprep.subr.mxu0 0.0
    %434 = vmatpush1.msra.mxu0 0.0
    %435 = vmatprep.subr.mxu0 0.0
    %436 = vmatpush1.msra.mxu0 0.0
    %437 = vmatprep.subr.mxu0 0.0
    %438 = vmatpush1.msra.mxu0 0.0
    %439 = vmatprep.subr.mxu0 0.0
    %440 = vmatpush1.msra.mxu0 0.0
    %441 = vmatprep.mubr.f32.mxu0 0.0
    %442 = vmatmul.mubr.f32.gmra.mrb[0].mxu0 %v353
    %v443 = vpop.f32.mrb[0].mxu0
    %v444 = vadd.f32 %v375, %v443
    %v445 = vpop.f32.mrb[0].mxu0
    %446 = vdwg.mxu0
    %vm447 = vcmask 15360
    %448 = vst.msk [vmem:[%s5] sm:$0xff] %vm447, %v444
    // Predicated region
    $region26: #{tpu_custom_call.1} parent=1 // pred_check
      _
    $region27: #{tpu_custom_call.1} parent=1 // pred_check_branch
      %450 = sbr.rel (0) target = $region29
    $region28: #{tpu_custom_call.1} parent=1 // pred_region
      _
    $region29: #{tpu_custom_call.1} parent=1 // pred_fallthru
      _
    // Predicated region
    $region30: #{tpu_custom_call.1} parent=1 // pred_check
      _
    $region31: #{tpu_custom_call.1} parent=1 // pred_check_branch
      %452 = sbr.rel (0) target = $region33
    $region32: #{tpu_custom_call.1} parent=1 // pred_region
      _
    $region33: #{tpu_custom_call.1} parent=1 // pred_fallthru
      _
    %453 = vsyncpa [#allocation3], 1

</llo_original>
